<compile_context>
chip_gen: v7x
topology: tpu7x:2x2x1
jax: 0.10.0
libtpu: 0.0.40
codegen_flags: <defaults>
</compile_context>

<pallas_src>
import jax
import jax.numpy as jnp
from jax.experimental import pallas as pl
from jax.experimental.pallas import tpu as pltpu


# ----------------------------------------------------------------------------
# Kernel
# ----------------------------------------------------------------------------
def _encoder_action_kernel(x_ref, w1_ref, b1_ref, w2_ref, b2_ref,
                           w3_ref, b3_ref, wh_ref, bh_ref, out_ref):
    """3x (Linear + ReLU) shared encoder followed by the fused head matmul.

    All matmuls accumulate in f32 on the MXU; activations are cast back to the
    weight dtype between layers so a bf16 parameter set keeps the MXU on its
    bf16-native path (matters most on v5e).  Bias adds / ReLU stay on the f32
    accumulator (VPU).
    """
    cdt = w1_ref.dtype
    x = x_ref[...].astype(cdt)

    h = jnp.dot(x, w1_ref[...], preferred_element_type=jnp.float32) + b1_ref[...]
    h = jnp.maximum(h, 0.0).astype(cdt)
    h = jnp.dot(h, w2_ref[...], preferred_element_type=jnp.float32) + b2_ref[...]
    h = jnp.maximum(h, 0.0).astype(cdt)
    h = jnp.dot(h, w3_ref[...], preferred_element_type=jnp.float32) + b3_ref[...]
    h = jnp.maximum(h, 0.0).astype(cdt)

    # All output heads fused into a single matmul + one unpadded store.
    out = jnp.dot(h, wh_ref[...], preferred_element_type=jnp.float32) + bh_ref[...]
    out_ref[...] = out.astype(out_ref.dtype)


# ----------------------------------------------------------------------------
# Tiling helpers (generation-aware)
# ----------------------------------------------------------------------------
def _tpu_topology():
    """(tensorcores_per_chip, usable VMEM budget bytes) -- heuristic, safe fallback."""
    kind = ""
    try:
        kind = jax.devices()[0].device_kind.lower()
    except Exception:
        pass
    if "v7" in kind or "tpu7" in kind:
        return 2, 40 * 1024 * 1024      # v7x: 64 MiB physical VMEM, 2 TCs/chip
    return 1, 64 * 1024 * 1024          # v5e / v6e: 128 MiB physical, 1 TC


def _per_row_vmem_bytes(compute_itemsize):
    # x tile + out tile are lane-padded to 128 in VMEM and double-buffered,
    # plus f32 intermediates; deliberately conservative.
    return 2 * 2 * 128 * compute_itemsize + 3 * 128 * 4


def _pick_batch_tile(B, num_cores, vmem_budget, compute_itemsize):
    """Largest multiple-of-8 batch tile that fits half the VMEM budget
    (capped at 8192 rows).  On multi-TensorCore chips keep >= num_cores grid
    steps so ("parallel",) semantics can shard steps across cores."""
    cap = max(8, min(8192, (vmem_budget // 2) // _per_row_vmem_bytes(compute_itemsize)))
    if num_cores > 1:
        cap = min(cap, max(8, pl.cdiv(B, num_cores)))
    tile = min(cap, B)
    return max(8, ((tile + 7) // 8) * 8)


# ----------------------------------------------------------------------------
# One-time parameter preparation (hoisted out of the forward)
# ----------------------------------------------------------------------------
def prepare_encoder_action_params(params, *, factorized_representation,
                                  compute_dtype=jnp.float32):
    """Concatenate the head Linears into one fused weight/bias and cast the
    weights to the compute dtype (biases stay f32 for the f32 accumulator).
    Do this once per parameter set, not per forward call."""
    if factorized_representation:
        head_keys = ("style_mu", "style_logvar", "class_mu", "class_logvar")
    else:
        head_keys = ("class_mu", "class_logvar")
    head_dims = tuple(int(params[k + "_w"].shape[1]) for k in head_keys)

    cdt = jnp.dtype(compute_dtype)
    prepared = {
        "enc1_w": params["enc1_w"].astype(cdt),
        "enc1_b": params["enc1_b"].astype(jnp.float32),
        "enc2_w": params["enc2_w"].astype(cdt),
        "enc2_b": params["enc2_b"].astype(jnp.float32),
        "enc3_w": params["enc3_w"].astype(cdt),
        "enc3_b": params["enc3_b"].astype(jnp.float32),
        "head_w": jnp.concatenate([params[k + "_w"] for k in head_keys],
                                  axis=1).astype(cdt),
        "head_b": jnp.concatenate([params[k + "_b"] for k in head_keys],
                                  axis=1).astype(jnp.float32),
    }
    return prepared, head_dims


# ----------------------------------------------------------------------------
# Forward
# ----------------------------------------------------------------------------
def encoder_action_forward(x, prepared, *, head_dims, factorized_representation,
                           batch_tile=None, out_dtype=None):
    """Pallas forward of EncoderAction.

    Returns (style_mu, style_logvar, class_mu, class_logvar); the first two are
    None when factorized_representation is False (matching the PyTorch module).
    """
    B, input_dim = x.shape
    total = int(sum(head_dims))
    out_dtype = x.dtype if out_dtype is None else jnp.dtype(out_dtype)
    compute_dtype = prepared["enc1_w"].dtype
    compute_itemsize = jnp.dtype(compute_dtype).itemsize

    num_cores, vmem_budget = _tpu_topology()
    if batch_tile is None:
        batch_tile = _pick_batch_tile(B, num_cores, vmem_budget, compute_itemsize)
    batch_tile = max(8, (int(batch_tile) // 8) * 8)

    # bf16 path: cast x once (halves the x read bytes inside the kernel).
    if x.dtype != compute_dtype:
        x = x.astype(compute_dtype)
    # Pad the batch to a multiple of the tile (zero rows, sliced off afterwards).
    B_pad = pl.cdiv(B, batch_tile) * batch_tile
    if B_pad != B:
        x = jnp.pad(x, ((0, B_pad - B), (0, 0)))

    inputs = [
        x,
        prepared["enc1_w"], prepared["enc1_b"],
        prepared["enc2_w"], prepared["enc2_b"],
        prepared["enc3_w"], prepared["enc3_b"],
        prepared["head_w"], prepared["head_b"],
    ]

    # Batch tiled along the single grid axis; parameters are small grid-invariant
    # full blocks (index_map -> (0, 0)), so no re-DMA across grid steps.
    x_spec = pl.BlockSpec((batch_tile, input_dim), lambda i: (i, 0))
    param_specs = [pl.BlockSpec(tuple(p.shape), lambda i: (0, 0)) for p in inputs[1:]]
    # Unpadded full-width output block: contiguous HBM writeback, no 128-lane
    # zero padding (4-8x fewer output bytes than a padded slab).
    out_spec = pl.BlockSpec((batch_tile, total), lambda i: (i, 0))

    param_bytes = sum(int(p.size) * p.dtype.itemsize for p in inputs[1:])
    vmem_needed = (batch_tile * _per_row_vmem_bytes(compute_itemsize)
                   + 2 * param_bytes + (1 << 20))
    ck = dict(dimension_semantics=("parallel",))
    if vmem_needed > 32 * 1024 * 1024:
        # Raise the scoped-VMEM limit only when the chosen tile needs it,
        # staying within the per-generation budget derived above.
        ck["vmem_limit_bytes"] = int(min(vmem_needed, vmem_budget))

    out = pl.pallas_call(
        _encoder_action_kernel,
        out_shape=jax.ShapeDtypeStruct((B_pad, total), out_dtype),
        grid_spec=pltpu.PrefetchScalarGridSpec(
            num_scalar_prefetch=0,
            grid=(B_pad // batch_tile,),
            in_specs=[x_spec] + param_specs,
            out_specs=out_spec,
        ),
        compiler_params=pltpu.CompilerParams(**ck),
    )(*inputs)

    # Split the fused head output (cheap static slices; in real use keep this
    # inside the consumer's jit so XLA fuses them with downstream ops).
    outs, off = [], 0
    for d in head_dims:
        outs.append(out[:B, off:off + d])
        off += d

    if factorized_representation:
        style_mu, style_logvar, class_mu, class_logvar = outs
        return style_mu, style_logvar, class_mu, class_logvar
    class_mu, class_logvar = outs
    return None, None, class_mu, class_logvar


# ----------------------------------------------------------------------------
# Parameter init (PyTorch nn.Linear default init) and plain-JAX reference
# ----------------------------------------------------------------------------
def _init_linear(key, fan_in, fan_out):
    """PyTorch nn.Linear default init: U(-1/sqrt(fan_in), 1/sqrt(fan_in)).
    Weight stored pre-transposed as (fan_in, fan_out); bias as (1, fan_out)."""
    kw, kb = jax.random.split(key)
    bound = 1.0 / jnp.sqrt(jnp.float32(fan_in))
    w = jax.random.uniform(kw, (fan_in, fan_out), jnp.float32, -bound, bound)
    b = jax.random.uniform(kb, (1, fan_out), jnp.float32, -bound, bound)
    return w, b


def init_encoder_action_params(key, input_dim, hidden_dim, style_dim, class_dim,
                               factorized_representation):
    keys = jax.random.split(key, 7)
    sc = style_dim + class_dim
    p = {}
    p["enc1_w"], p["enc1_b"] = _init_linear(keys[0], input_dim, hidden_dim)
    p["enc2_w"], p["enc2_b"] = _init_linear(keys[1], hidden_dim, hidden_dim)
    p["enc3_w"], p["enc3_b"] = _init_linear(keys[2], hidden_dim, sc)
    p["class_mu_w"], p["class_mu_b"] = _init_linear(keys[3], sc, class_dim)
    p["class_logvar_w"], p["class_logvar_b"] = _init_linear(keys[4], sc, class_dim)
    if factorized_representation:
        p["style_mu_w"], p["style_mu_b"] = _init_linear(keys[5], sc, style_dim)
        p["style_logvar_w"], p["style_logvar_b"] = _init_linear(keys[6], sc, style_dim)
    return p


def _reference_forward(x, params, factorized_representation):
    """Plain-JAX reference mirroring the PyTorch forward exactly (f32)."""
    relu = lambda v: jnp.maximum(v, 0.0)
    h = relu(x @ params["enc1_w"] + params["enc1_b"])
    h = relu(h @ params["enc2_w"] + params["enc2_b"])
    h = relu(h @ params["enc3_w"] + params["enc3_b"])
    class_mu = h @ params["class_mu_w"] + params["class_mu_b"]
    class_logvar = h @ params["class_logvar_w"] + params["class_logvar_b"]
    if factorized_representation:
        style_mu = h @ params["style_mu_w"] + params["style_mu_b"]
        style_logvar = h @ params["style_logvar_w"] + params["style_logvar_b"]
        return style_mu, style_logvar, class_mu, class_logvar
    return None, None, class_mu, class_logvar


if __name__ == "__main__":
    # Shapes consistent with the module's forward (flattened action input).
    input_dim = 16      # flattened action input
    hidden_dim = 32     # flags.dim
    style_dim = 8       # flags.style_dim
    class_dim = 8       # flags.class_dim

    key = jax.random.PRNGKey(0)
    k_params, k_x = jax.random.split(key)

    ok = True

    # --- Case 1: factorized representation, f32, multi-step grid (pipelining). --
    params = init_encoder_action_params(k_params, input_dim, hidden_dim,
                                        style_dim, class_dim, True)
    prep_f32, head_dims = prepare_encoder_action_params(
        params, factorized_representation=True)
    x = jax.random.normal(k_x, (256, input_dim), jnp.float32)
    outs = encoder_action_forward(x, prep_f32, head_dims=head_dims,
                                  factorized_representation=True, batch_tile=64)
    outs = jax.block_until_ready(outs)
    refs = _reference_forward(x, params, True)
    for o, r in zip(outs, refs):
        assert o.shape == r.shape and o.dtype == r.dtype
        # Tolerance covers MXU default-precision differences between the Pallas
        # matmuls and the XLA reference dots.
        ok &= bool(jnp.allclose(o, r, atol=2e-2, rtol=2e-2))

    # --- Case 2: non-factorized, odd batch (exercises row padding), auto tile. --
    params2 = init_encoder_action_params(k_params, input_dim, hidden_dim,
                                         style_dim, class_dim, False)
    prep2, head_dims2 = prepare_encoder_action_params(
        params2, factorized_representation=False)
    x2 = jax.random.normal(k_x, (10, input_dim), jnp.float32)
    outs2 = encoder_action_forward(x2, prep2, head_dims=head_dims2,
                                   factorized_representation=False)
    assert outs2[0] is None and outs2[1] is None
    outs2 = jax.block_until_ready(outs2[2:])
    refs2 = _reference_forward(x2, params2, False)[2:]
    for o, r in zip(outs2, refs2):
        assert o.shape == r.shape and o.dtype == r.dtype
        ok &= bool(jnp.allclose(o, r, atol=2e-2, rtol=2e-2))

    # --- Case 3: bf16 data path (bf16 weights/activations, f32 accumulation). ---
    prep_bf16, head_dims3 = prepare_encoder_action_params(
        params, factorized_representation=True, compute_dtype=jnp.bfloat16)
    outs3 = encoder_action_forward(x, prep_bf16, head_dims=head_dims3,
                                   factorized_representation=True)
    outs3 = jax.block_until_ready(outs3)
    for o, r in zip(outs3, refs):
        assert o.shape == r.shape and o.dtype == jnp.float32  # follows x dtype
        ok &= bool(jnp.allclose(o.astype(jnp.float32), r, atol=1.5e-1, rtol=1e-1))

    assert ok, "mismatch vs reference"
    print("KERNEL_OK")
</pallas_src>

<mosaic_0001>
module attributes {stable_mosaic.version = 11 : i64} {
  func.func @_encoder_action_kernel(%arg0: i32, %arg1: memref<64x16xf32, #tpu.memory_space<vmem>>, %arg2: memref<16x32xf32, #tpu.memory_space<vmem>>, %arg3: memref<1x32xf32, #tpu.memory_space<vmem>>, %arg4: memref<32x32xf32, #tpu.memory_space<vmem>>, %arg5: memref<1x32xf32, #tpu.memory_space<vmem>>, %arg6: memref<32x16xf32, #tpu.memory_space<vmem>>, %arg7: memref<1x16xf32, #tpu.memory_space<vmem>>, %arg8: memref<16x32xf32, #tpu.memory_space<vmem>>, %arg9: memref<1x32xf32, #tpu.memory_space<vmem>>, %arg10: memref<64x32xf32, #tpu.memory_space<vmem>>) attributes {dimension_semantics = [#tpu.dimension_semantics<parallel>], iteration_bounds = array<i64: 4>, scalar_prefetch = 0 : i64, scratch_operands = 0 : i64, tpu.core_type = #tpu.core_type<tc>, window_params = [{transform_indices = @transform_0, window_bounds = array<i64: 64, 16>}, {pipeline_mode = #tpu.pipeline_mode<synchronous>, transform_indices = @transform_1, window_bounds = array<i64: 16, 32>}, {pipeline_mode = #tpu.pipeline_mode<synchronous>, transform_indices = @transform_2, window_bounds = array<i64: 1, 32>}, {pipeline_mode = #tpu.pipeline_mode<synchronous>, transform_indices = @transform_3, window_bounds = array<i64: 32, 32>}, {pipeline_mode = #tpu.pipeline_mode<synchronous>, transform_indices = @transform_4, window_bounds = array<i64: 1, 32>}, {pipeline_mode = #tpu.pipeline_mode<synchronous>, transform_indices = @transform_5, window_bounds = array<i64: 32, 16>}, {pipeline_mode = #tpu.pipeline_mode<synchronous>, transform_indices = @transform_6, window_bounds = array<i64: 1, 16>}, {pipeline_mode = #tpu.pipeline_mode<synchronous>, transform_indices = @transform_7, window_bounds = array<i64: 16, 32>}, {pipeline_mode = #tpu.pipeline_mode<synchronous>, transform_indices = @transform_8, window_bounds = array<i64: 1, 32>}, {transform_indices = @transform_9, window_bounds = array<i64: 64, 32>}]} {
    %c0 = arith.constant 0 : index
    %c0_0 = arith.constant 0 : index
    %0 = vector.load %arg1[%c0, %c0_0] : memref<64x16xf32, #tpu.memory_space<vmem>>, vector<64x16xf32>
    %c0_1 = arith.constant 0 : index
    %c0_2 = arith.constant 0 : index
    %1 = vector.load %arg2[%c0_1, %c0_2] : memref<16x32xf32, #tpu.memory_space<vmem>>, vector<16x32xf32>
    %cst = arith.constant dense<0.000000e+00> : vector<64x32xf32>
    %2 = tpu.matmul %0, %1, %cst {dimension_numbers = #tpu.dot_dimension_numbers<[1], [0], [0], [1], [0, 0, 1, 1], [], []>} : vector<64x16xf32>, vector<16x32xf32>, vector<64x32xf32> -> vector<64x32xf32>
    %c0_3 = arith.constant 0 : index
    %c0_4 = arith.constant 0 : index
    %3 = vector.load %arg3[%c0_3, %c0_4] : memref<1x32xf32, #tpu.memory_space<vmem>>, vector<1x32xf32>
    %4 = vector.broadcast %3 : vector<1x32xf32> to vector<64x32xf32>
    %5 = arith.addf %2, %4 : vector<64x32xf32>
    %cst_5 = arith.constant 0.000000e+00 : f32
    %6 = vector.broadcast %cst_5 : f32 to vector<64x32xf32>
    %7 = arith.maximumf %5, %6 : vector<64x32xf32>
    %c0_6 = arith.constant 0 : index
    %c0_7 = arith.constant 0 : index
    %8 = vector.load %arg4[%c0_6, %c0_7] : memref<32x32xf32, #tpu.memory_space<vmem>>, vector<32x32xf32>
    %cst_8 = arith.constant dense<0.000000e+00> : vector<64x32xf32>
    %9 = tpu.matmul %7, %8, %cst_8 {dimension_numbers = #tpu.dot_dimension_numbers<[1], [0], [0], [1], [0, 0, 1, 1], [], []>} : vector<64x32xf32>, vector<32x32xf32>, vector<64x32xf32> -> vector<64x32xf32>
    %c0_9 = arith.constant 0 : index
    %c0_10 = arith.constant 0 : index
    %10 = vector.load %arg5[%c0_9, %c0_10] : memref<1x32xf32, #tpu.memory_space<vmem>>, vector<1x32xf32>
    %11 = vector.broadcast %10 : vector<1x32xf32> to vector<64x32xf32>
    %12 = arith.addf %9, %11 : vector<64x32xf32>
    %cst_11 = arith.constant 0.000000e+00 : f32
    %13 = vector.broadcast %cst_11 : f32 to vector<64x32xf32>
    %14 = arith.maximumf %12, %13 : vector<64x32xf32>
    %c0_12 = arith.constant 0 : index
    %c0_13 = arith.constant 0 : index
    %15 = vector.load %arg6[%c0_12, %c0_13] : memref<32x16xf32, #tpu.memory_space<vmem>>, vector<32x16xf32>
    %cst_14 = arith.constant dense<0.000000e+00> : vector<64x16xf32>
    %16 = tpu.matmul %14, %15, %cst_14 {dimension_numbers = #tpu.dot_dimension_numbers<[1], [0], [0], [1], [0, 0, 1, 1], [], []>} : vector<64x32xf32>, vector<32x16xf32>, vector<64x16xf32> -> vector<64x16xf32>
    %c0_15 = arith.constant 0 : index
    %c0_16 = arith.constant 0 : index
    %17 = vector.load %arg7[%c0_15, %c0_16] : memref<1x16xf32, #tpu.memory_space<vmem>>, vector<1x16xf32>
    %18 = vector.broadcast %17 : vector<1x16xf32> to vector<64x16xf32>
    %19 = arith.addf %16, %18 : vector<64x16xf32>
    %cst_17 = arith.constant 0.000000e+00 : f32
    %20 = vector.broadcast %cst_17 : f32 to vector<64x16xf32>
    %21 = arith.maximumf %19, %20 : vector<64x16xf32>
    %c0_18 = arith.constant 0 : index
    %c0_19 = arith.constant 0 : index
    %22 = vector.load %arg8[%c0_18, %c0_19] : memref<16x32xf32, #tpu.memory_space<vmem>>, vector<16x32xf32>
    %cst_20 = arith.constant dense<0.000000e+00> : vector<64x32xf32>
    %23 = tpu.matmul %21, %22, %cst_20 {dimension_numbers = #tpu.dot_dimension_numbers<[1], [0], [0], [1], [0, 0, 1, 1], [], []>} : vector<64x16xf32>, vector<16x32xf32>, vector<64x32xf32> -> vector<64x32xf32>
    %c0_21 = arith.constant 0 : index
    %c0_22 = arith.constant 0 : index
    %24 = vector.load %arg9[%c0_21, %c0_22] : memref<1x32xf32, #tpu.memory_space<vmem>>, vector<1x32xf32>
    %25 = vector.broadcast %24 : vector<1x32xf32> to vector<64x32xf32>
    %26 = arith.addf %23, %25 : vector<64x32xf32>
    %c0_23 = arith.constant 0 : index
    %c0_24 = arith.constant 0 : index
    %27 = vector.load %arg10[%c0_23, %c0_24] : memref<64x32xf32, #tpu.memory_space<vmem>>, vector<64x32xf32>
    tpu.vector_store %arg10[%c0_23, %c0_24], %26 {strides = array<i32>} : memref<64x32xf32, #tpu.memory_space<vmem>>, vector<64x32xf32>,
    return
  }
  func.func @transform_0(%arg0: i32) -> (i32, i32) {
    %c0_i32 = arith.constant 0 : i32
    %c0_i32_0 = arith.constant 0 : i32
    return %arg0, %c0_i32 : i32, i32
  }
  func.func @transform_1(%arg0: i32) -> (i32, i32) {
    %c0_i32 = arith.constant 0 : i32
    %c0_i32_0 = arith.constant 0 : i32
    %c0_i32_1 = arith.constant 0 : i32
    return %c0_i32, %c0_i32_0 : i32, i32
  }
  func.func @transform_2(%arg0: i32) -> (i32, i32) {
    %c0_i32 = arith.constant 0 : i32
    %c0_i32_0 = arith.constant 0 : i32
    %c0_i32_1 = arith.constant 0 : i32
    return %c0_i32, %c0_i32_0 : i32, i32
  }
  func.func @transform_3(%arg0: i32) -> (i32, i32) {
    %c0_i32 = arith.constant 0 : i32
    %c0_i32_0 = arith.constant 0 : i32
    %c0_i32_1 = arith.constant 0 : i32
    return %c0_i32, %c0_i32_0 : i32, i32
  }
  func.func @transform_4(%arg0: i32) -> (i32, i32) {
    %c0_i32 = arith.constant 0 : i32
    %c0_i32_0 = arith.constant 0 : i32
    %c0_i32_1 = arith.constant 0 : i32
    return %c0_i32, %c0_i32_0 : i32, i32
  }
  func.func @transform_5(%arg0: i32) -> (i32, i32) {
    %c0_i32 = arith.constant 0 : i32
    %c0_i32_0 = arith.constant 0 : i32
    %c0_i32_1 = arith.constant 0 : i32
    return %c0_i32, %c0_i32_0 : i32, i32
  }
  func.func @transform_6(%arg0: i32) -> (i32, i32) {
    %c0_i32 = arith.constant 0 : i32
    %c0_i32_0 = arith.constant 0 : i32
    %c0_i32_1 = arith.constant 0 : i32
    return %c0_i32, %c0_i32_0 : i32, i32
  }
  func.func @transform_7(%arg0: i32) -> (i32, i32) {
    %c0_i32 = arith.constant 0 : i32
    %c0_i32_0 = arith.constant 0 : i32
    %c0_i32_1 = arith.constant 0 : i32
    return %c0_i32, %c0_i32_0 : i32, i32
  }
  func.func @transform_8(%arg0: i32) -> (i32, i32) {
    %c0_i32 = arith.constant 0 : i32
    %c0_i32_0 = arith.constant 0 : i32
    %c0_i32_1 = arith.constant 0 : i32
    return %c0_i32, %c0_i32_0 : i32, i32
  }
  func.func @transform_9(%arg0: i32) -> (i32, i32) {
    %c0_i32 = arith.constant 0 : i32
    %c0_i32_0 = arith.constant 0 : i32
    return %arg0, %c0_i32 : i32, i32
  }
}

</mosaic_0001>

<llo_original>
// kernel: tpu_custom_call.1
$region0: #{tpu_custom_call.1}
  #allocation0 [shape = 'u32[]', space=smem, size = 0x4, offset = 0x4, fixed_abs, tag = 'smem constant byte address 0x4 - core index']
  #allocation1 [shape = 'u32[144,128]{1,0:T(1,128)}', space=vmem, size = 0x12000, scoped, tag = 'internal scratch']
  %s0 = inlined_call_operand.vmem [shape: f32[256,16], index: 0, kind: input, shape index: {}]
  %s1 = inlined_call_operand.vmem [shape: f32[16,32], index: 1, kind: input, shape index: {}]
  %s2 = inlined_call_operand.vmem [shape: f32[1,32], index: 2, kind: input, shape index: {}]
  %s3 = inlined_call_operand.vmem [shape: f32[32,32], index: 3, kind: input, shape index: {}]
  %s4 = inlined_call_operand.vmem [shape: f32[1,32], index: 4, kind: input, shape index: {}]
  %s5 = inlined_call_operand.vmem [shape: f32[32,16], index: 5, kind: input, shape index: {}]
  %s6 = inlined_call_operand.vmem [shape: f32[1,16], index: 6, kind: input, shape index: {}]
  %s7 = inlined_call_operand.vmem [shape: f32[16,32], index: 7, kind: input, shape index: {}]
  %s8 = inlined_call_operand.vmem [shape: f32[1,32], index: 8, kind: input, shape index: {}]
  %s9 = inlined_call_operand.vmem [shape: f32[256,32], index: 9, kind: output, shape index: {}]
  %s10 = sld [smem:[#allocation0]]
  $region69: #{tpu_custom_call.1} parent=0
    _
  %s12 = ssub.s32 1, %s10
  %s13 = scalar_select 0, %s12, %s10
  loop: start=0, step=1, limit=6
  $region2: #{tpu_custom_call.1} parent=0 // loop_pre_header
    _
  $region3: #{tpu_custom_call.1} parent=0 // loop_header
    %s15 = sphi 0, %s19
    %p16 = scmp.ge.s32.totalorder %s15, 6
    %s25 = sphi 0, %s27
    %s28 = sphi 0, %s25
    %s29 = sphi 0, %s28
    %s45 = sphi 0, %s29
    %s49 = sphi 0, %s49
    %s51 = sphi 0, %s49
    %s52 = sphi 0, %s51
    %s66 = sphi 0, %s52
    %s70 = sphi 0, %s70
    %s72 = sphi 0, %s70
    %s73 = sphi 0, %s72
    %s87 = sphi 0, %s73
    %s91 = sphi 0, %s91
    %s93 = sphi 0, %s91
    %s94 = sphi 0, %s93
    %s108 = sphi 0, %s94
    %s112 = sphi 0, %s112
    %s114 = sphi 0, %s112
    %s115 = sphi 0, %s114
    %s129 = sphi 0, %s115
    %s133 = sphi 0, %s133
    %s135 = sphi 0, %s133
    %s136 = sphi 0, %s135
    %s150 = sphi 0, %s136
    %s154 = sphi 0, %s154
    %s156 = sphi 0, %s154
    %s157 = sphi 0, %s156
    %s171 = sphi 0, %s157
    %s175 = sphi 0, %s175
    %s177 = sphi 0, %s175
    %s178 = sphi 0, %s177
    %s192 = sphi 0, %s178
    %s196 = sphi 0, %s196
    %s198 = sphi 0, %s196
    %s199 = sphi 0, %s198
    %s213 = sphi 0, %s199
    %s219 = sphi 0, %s221
    %s222 = sphi 0, %s219
    %s223 = sphi 0, %s222
    %s239 = sphi 0, %s223
  $region4: #{tpu_custom_call.1} parent=0 // loop_header_branch
    %18 = sbr.rel (%p16) target = $region8
  $region5: #{tpu_custom_call.1} parent=0 // loop_body
    %s20 = ssub.s32 %s15, 1
    %s21 = ssub.s32 %s15, 2
    %s22 = sadd.s32 %s15, 1
    %s23 = ssub.s32 %s15, %s22
    %p24 = scmp.eq.s32.totalorder %s23, 0
    %s26 = sadd.s32 %s25, 1
    %s27 = scalar_select %p24, %s25, %s26
    %p30 = pneg %p24
    %p31 = scmp.eq.s32.totalorder %s15, 3
    %p32 = por %p30, %p31
    %p33 = scmp.ne.s32.totalorder %s25, %s28
    %p34 = scmp.eq.s32.totalorder %s15, 0
    %p35 = por %p33, %p34
    %p36 = scmp.ne.s32.totalorder %s25, %s28
    %p37 = scmp.eq.s32.totalorder %s20, 3
    %p38 = por %p36, %p37
    %p39 = scmp.ne.s32.totalorder %s28, %s29
    %p40 = scmp.eq.s32.totalorder %s20, 0
    %p41 = por %p39, %p40
    %p42 = scmp.ne.s32.totalorder %s28, %s29
    %p43 = scmp.eq.s32.totalorder %s21, 3
    %p44 = por %p42, %p43
    %p46 = scmp.ne.s32.totalorder %s29, %s45
    %p47 = scmp.eq.s32.totalorder %s21, 0
    %p48 = por %p46, %p47
    %s50 = sadd.s32 %s49, 1
    %p53 = scmp.eq.s32.totalorder %s15, 3
    %p54 = scmp.ne.s32.totalorder %s49, %s51
    %p55 = scmp.eq.s32.totalorder %s15, 0
    %p56 = por %p54, %p55
    %p57 = scmp.ne.s32.totalorder %s49, %s51
    %p58 = scmp.eq.s32.totalorder %s20, 3
    %p59 = por %p57, %p58
    %p60 = scmp.ne.s32.totalorder %s51, %s52
    %p61 = scmp.eq.s32.totalorder %s20, 0
    %p62 = por %p60, %p61
    %p63 = scmp.ne.s32.totalorder %s51, %s52
    %p64 = scmp.eq.s32.totalorder %s21, 3
    %p65 = por %p63, %p64
    %p67 = scmp.ne.s32.totalorder %s52, %s66
    %p68 = scmp.eq.s32.totalorder %s21, 0
    %p69 = por %p67, %p68
    %s71 = sadd.s32 %s70, 1
    %p74 = scmp.eq.s32.totalorder %s15, 3
    %p75 = scmp.ne.s32.totalorder %s70, %s72
    %p76 = scmp.eq.s32.totalorder %s15, 0
    %p77 = por %p75, %p76
    %p78 = scmp.ne.s32.totalorder %s70, %s72
    %p79 = scmp.eq.s32.totalorder %s20, 3
    %p80 = por %p78, %p79
    %p81 = scmp.ne.s32.totalorder %s72, %s73
    %p82 = scmp.eq.s32.totalorder %s20, 0
    %p83 = por %p81, %p82
    %p84 = scmp.ne.s32.totalorder %s72, %s73
    %p85 = scmp.eq.s32.totalorder %s21, 3
    %p86 = por %p84, %p85
    %p88 = scmp.ne.s32.totalorder %s73, %s87
    %p89 = scmp.eq.s32.totalorder %s21, 0
    %p90 = por %p88, %p89
    %s92 = sadd.s32 %s91, 1
    %p95 = scmp.eq.s32.totalorder %s15, 3
    %p96 = scmp.ne.s32.totalorder %s91, %s93
    %p97 = scmp.eq.s32.totalorder %s15, 0
    %p98 = por %p96, %p97
    %p99 = scmp.ne.s32.totalorder %s91, %s93
    %p100 = scmp.eq.s32.totalorder %s20, 3
    %p101 = por %p99, %p100
    %p102 = scmp.ne.s32.totalorder %s93, %s94
    %p103 = scmp.eq.s32.totalorder %s20, 0
    %p104 = por %p102, %p103
    %p105 = scmp.ne.s32.totalorder %s93, %s94
    %p106 = scmp.eq.s32.totalorder %s21, 3
    %p107 = por %p105, %p106
    %p109 = scmp.ne.s32.totalorder %s94, %s108
    %p110 = scmp.eq.s32.totalorder %s21, 0
    %p111 = por %p109, %p110
    %s113 = sadd.s32 %s112, 1
    %p116 = scmp.eq.s32.totalorder %s15, 3
    %p117 = scmp.ne.s32.totalorder %s112, %s114
    %p118 = scmp.eq.s32.totalorder %s15, 0
    %p119 = por %p117, %p118
    %p120 = scmp.ne.s32.totalorder %s112, %s114
    %p121 = scmp.eq.s32.totalorder %s20, 3
    %p122 = por %p120, %p121
    %p123 = scmp.ne.s32.totalorder %s114, %s115
    %p124 = scmp.eq.s32.totalorder %s20, 0
    %p125 = por %p123, %p124
    %p126 = scmp.ne.s32.totalorder %s114, %s115
    %p127 = scmp.eq.s32.totalorder %s21, 3
    %p128 = por %p126, %p127
    %p130 = scmp.ne.s32.totalorder %s115, %s129
    %p131 = scmp.eq.s32.totalorder %s21, 0
    %p132 = por %p130, %p131
    %s134 = sadd.s32 %s133, 1
    %p137 = scmp.eq.s32.totalorder %s15, 3
    %p138 = scmp.ne.s32.totalorder %s133, %s135
    %p139 = scmp.eq.s32.totalorder %s15, 0
    %p140 = por %p138, %p139
    %p141 = scmp.ne.s32.totalorder %s133, %s135
    %p142 = scmp.eq.s32.totalorder %s20, 3
    %p143 = por %p141, %p142
    %p144 = scmp.ne.s32.totalorder %s135, %s136
    %p145 = scmp.eq.s32.totalorder %s20, 0
    %p146 = por %p144, %p145
    %p147 = scmp.ne.s32.totalorder %s135, %s136
    %p148 = scmp.eq.s32.totalorder %s21, 3
    %p149 = por %p147, %p148
    %p151 = scmp.ne.s32.totalorder %s136, %s150
    %p152 = scmp.eq.s32.totalorder %s21, 0
    %p153 = por %p151, %p152
    %s155 = sadd.s32 %s154, 1
    %p158 = scmp.eq.s32.totalorder %s15, 3
    %p159 = scmp.ne.s32.totalorder %s154, %s156
    %p160 = scmp.eq.s32.totalorder %s15, 0
    %p161 = por %p159, %p160
    %p162 = scmp.ne.s32.totalorder %s154, %s156
    %p163 = scmp.eq.s32.totalorder %s20, 3
    %p164 = por %p162, %p163
    %p165 = scmp.ne.s32.totalorder %s156, %s157
    %p166 = scmp.eq.s32.totalorder %s20, 0
    %p167 = por %p165, %p166
    %p168 = scmp.ne.s32.totalorder %s156, %s157
    %p169 = scmp.eq.s32.totalorder %s21, 3
    %p170 = por %p168, %p169
    %p172 = scmp.ne.s32.totalorder %s157, %s171
    %p173 = scmp.eq.s32.totalorder %s21, 0
    %p174 = por %p172, %p173
    %s176 = sadd.s32 %s175, 1
    %p179 = scmp.eq.s32.totalorder %s15, 3
    %p180 = scmp.ne.s32.totalorder %s175, %s177
    %p181 = scmp.eq.s32.totalorder %s15, 0
    %p182 = por %p180, %p181
    %p183 = scmp.ne.s32.totalorder %s175, %s177
    %p184 = scmp.eq.s32.totalorder %s20, 3
    %p185 = por %p183, %p184
    %p186 = scmp.ne.s32.totalorder %s177, %s178
    %p187 = scmp.eq.s32.totalorder %s20, 0
    %p188 = por %p186, %p187
    %p189 = scmp.ne.s32.totalorder %s177, %s178
    %p190 = scmp.eq.s32.totalorder %s21, 3
    %p191 = por %p189, %p190
    %p193 = scmp.ne.s32.totalorder %s178, %s192
    %p194 = scmp.eq.s32.totalorder %s21, 0
    %p195 = por %p193, %p194
    %s197 = sadd.s32 %s196, 1
    %p200 = scmp.eq.s32.totalorder %s15, 3
    %p201 = scmp.ne.s32.totalorder %s196, %s198
    %p202 = scmp.eq.s32.totalorder %s15, 0
    %p203 = por %p201, %p202
    %p204 = scmp.ne.s32.totalorder %s196, %s198
    %p205 = scmp.eq.s32.totalorder %s20, 3
    %p206 = por %p204, %p205
    %p207 = scmp.ne.s32.totalorder %s198, %s199
    %p208 = scmp.eq.s32.totalorder %s20, 0
    %p209 = por %p207, %p208
    %p210 = scmp.ne.s32.totalorder %s198, %s199
    %p211 = scmp.eq.s32.totalorder %s21, 3
    %p212 = por %p210, %p211
    %p214 = scmp.ne.s32.totalorder %s199, %s213
    %p215 = scmp.eq.s32.totalorder %s21, 0
    %p216 = por %p214, %p215
    %s217 = ssub.s32 %s15, %s22
    %p218 = scmp.eq.s32.totalorder %s217, 0
    %s220 = sadd.s32 %s219, 1
    %s221 = scalar_select %p218, %s219, %s220
    %p224 = pneg %p218
    %p225 = scmp.eq.s32.totalorder %s15, 3
    %p226 = por %p224, %p225
    %p227 = scmp.ne.s32.totalorder %s219, %s222
    %p228 = scmp.eq.s32.totalorder %s15, 0
    %p229 = por %p227, %p228
    %p230 = scmp.ne.s32.totalorder %s219, %s222
    %p231 = scmp.eq.s32.totalorder %s20, 3
    %p232 = por %p230, %p231
    %p233 = scmp.ne.s32.totalorder %s222, %s223
    %p234 = scmp.eq.s32.totalorder %s20, 0
    %p235 = por %p233, %p234
    %p236 = scmp.ne.s32.totalorder %s222, %s223
    %p237 = scmp.eq.s32.totalorder %s21, 3
    %p238 = por %p236, %p237
    %p240 = scmp.ne.s32.totalorder %s223, %s239
    %p241 = scmp.eq.s32.totalorder %s21, 0
    %p242 = por %p240, %p241
    %p243 = scmp.le.s32.totalorder 1, %s15
    %p244 = scmp.lt.s32.totalorder %s15, 5
    %p245 = pnand %p243, %p244
    %p246 = pneg %p245
    // Predicated region
    $region9: #{tpu_custom_call.1} parent=5 // pred_check
      _
    $region10: #{tpu_custom_call.1} parent=5 // pred_check_branch
      %248 = sbr.rel (%p245) target = $region12
    $region11: #{tpu_custom_call.1} parent=5 // pred_region
      %s249 = ssub.s32 %s15, 1
      // Predicated region
      $region13: #{tpu_custom_call.1} parent=11 // pred_check
        %p250 = pneg %p62
      $region14: #{tpu_custom_call.1} parent=11 // pred_check_branch
        %252 = sbr.rel (%p250) target = $region16
      $region15: #{tpu_custom_call.1} parent=11 // pred_region
        _
      $region16: #{tpu_custom_call.1} parent=11 // pred_fallthru
        _
      // Predicated region
      $region17: #{tpu_custom_call.1} parent=11 // pred_check
        %p253 = pneg %p83
      $region18: #{tpu_custom_call.1} parent=11 // pred_check_branch
        %255 = sbr.rel (%p253) target = $region20
      $region19: #{tpu_custom_call.1} parent=11 // pred_region
        _
      $region20: #{tpu_custom_call.1} parent=11 // pred_fallthru
        _
      // Predicated region
      $region21: #{tpu_custom_call.1} parent=11 // pred_check
        %p256 = pneg %p104
      $region22: #{tpu_custom_call.1} parent=11 // pred_check_branch
        %258 = sbr.rel (%p256) target = $region24
      $region23: #{tpu_custom_call.1} parent=11 // pred_region
        _
      $region24: #{tpu_custom_call.1} parent=11 // pred_fallthru
        _
      // Predicated region
      $region25: #{tpu_custom_call.1} parent=11 // pred_check
        %p259 = pneg %p125
      $region26: #{tpu_custom_call.1} parent=11 // pred_check_branch
        %261 = sbr.rel (%p259) target = $region28
      $region27: #{tpu_custom_call.1} parent=11 // pred_region
        _
      $region28: #{tpu_custom_call.1} parent=11 // pred_fallthru
        _
      // Predicated region
      $region29: #{tpu_custom_call.1} parent=11 // pred_check
        %p262 = pneg %p146
      $region30: #{tpu_custom_call.1} parent=11 // pred_check_branch
        %264 = sbr.rel (%p262) target = $region32
      $region31: #{tpu_custom_call.1} parent=11 // pred_region
        _
      $region32: #{tpu_custom_call.1} parent=11 // pred_fallthru
        _
      // Predicated region
      $region33: #{tpu_custom_call.1} parent=11 // pred_check
        %p265 = pneg %p167
      $region34: #{tpu_custom_call.1} parent=11 // pred_check_branch
        %267 = sbr.rel (%p265) target = $region36
      $region35: #{tpu_custom_call.1} parent=11 // pred_region
        _
      $region36: #{tpu_custom_call.1} parent=11 // pred_fallthru
        _
      // Predicated region
      $region37: #{tpu_custom_call.1} parent=11 // pred_check
        %p268 = pneg %p188
      $region38: #{tpu_custom_call.1} parent=11 // pred_check_branch
        %270 = sbr.rel (%p268) target = $region40
      $region39: #{tpu_custom_call.1} parent=11 // pred_region
        _
      $region40: #{tpu_custom_call.1} parent=11 // pred_fallthru
        _
      // Predicated region
      $region41: #{tpu_custom_call.1} parent=11 // pred_check
        %p271 = pneg %p209
      $region42: #{tpu_custom_call.1} parent=11 // pred_check_branch
        %273 = sbr.rel (%p271) target = $region44
      $region43: #{tpu_custom_call.1} parent=11 // pred_region
        _
      $region44: #{tpu_custom_call.1} parent=11 // pred_fallthru
        _
    $region12: #{tpu_custom_call.1} parent=5 // pred_fallthru
      _
    %p274 = scmp.lt.s32.totalorder %s15, 4
    // Predicated region
    $region45: #{tpu_custom_call.1} parent=5 // pred_check
      %p275 = pneg %p274
    $region46: #{tpu_custom_call.1} parent=5 // pred_check_branch
      %277 = sbr.rel (%p275) target = $region48
    $region47: #{tpu_custom_call.1} parent=5 // pred_region
      // Predicated region
      $region49: #{tpu_custom_call.1} parent=47 // pred_check
        %p278 = pneg %p35
      $region50: #{tpu_custom_call.1} parent=47 // pred_check_branch
        %280 = sbr.rel (%p278) target = $region52
      $region51: #{tpu_custom_call.1} parent=47 // pred_region
        %s281 = smul.u32 8, %s15
        %p282 = scmp.lt.s32.totalorder %s281, 31
        %s283 = scalar_select %p282, %s281, 31
        %s284 = smul.addr %s283, 8
        %s285 = scalar_lea.vmem %s0, %s284
        %s286 = smul.u32 8, %s15
      $region52: #{tpu_custom_call.1} parent=47 // pred_fallthru
        _
    $region48: #{tpu_custom_call.1} parent=5 // pred_fallthru
      _
    %p287 = scmp.le.s32.totalorder 1, %s15
    %p288 = scmp.lt.s32.totalorder %s15, 5
    %p289 = pnand %p287, %p288
    %p290 = pneg %p289
    // Predicated region
    $region53: #{tpu_custom_call.1} parent=5 // pred_check
      _
    $region54: #{tpu_custom_call.1} parent=5 // pred_check_branch
      %292 = sbr.rel (%p289) target = $region56
    $region55: #{tpu_custom_call.1} parent=5 // pred_region
      %s293 = ssub.s32 %s15, 1
      %s294 = smul.u32 8, %s20
      %p295 = scmp.lt.s32.totalorder %s294, 31
      %s296 = scalar_select %p295, %s294, 31
      %s297 = smul.addr %s296, 8
      %s298 = scalar_lea.vmem %s0, %s297
      %p299 = pneg %p41
      %p300 = pneg %p38
      %p301 = pneg %p62
      %p302 = pneg %p59
      %p303 = pneg %p83
      %p304 = pneg %p80
      %p305 = pneg %p104
      %p306 = pneg %p101
      %p307 = pneg %p125
      %p308 = pneg %p122
      %p309 = pneg %p146
      %p310 = pneg %p143
      %p311 = pneg %p167
      %p312 = pneg %p164
      %p313 = pneg %p188
      %p314 = pneg %p185
      %p315 = pneg %p209
      %p316 = pneg %p206
      %p317 = pneg %p235
      %p318 = pneg %p232
      %s319 = smul.u32 8, %s20
      %p320 = scmp.lt.s32.totalorder %s319, 31
      %s321 = scalar_select %p320, %s319, 31
      %s322 = smul.addr %s321, 8
      %s323 = scalar_lea.vmem %s9, %s322
      %s324 = smul.u32 8, %s20
      %p325 = scmp.lt.s32.totalorder %s324, 31
      %s326 = scalar_select %p325, %s324, 31
      %s327 = smul.addr %s326, 8
      %s328 = scalar_lea.vmem %s0, %s327
      %s329 = smul.u32 8, %s20
      %s330 = smul.u32 8, %s20
      %p331 = scmp.lt.s32.totalorder %s330, 31
      %s332 = scalar_select %p331, %s330, 31
      %s333 = smul.addr %s332, 8
      %s334 = scalar_lea.vmem %s9, %s333
      %s335 = smul.u32 8, %s20
      %v336 = vld [vmem:[%s328] sm:$0xff]
      %v337 = vld [vmem:[%s328 + $0x8] sm:$0xff]
      %v338 = vld [vmem:[%s328 + $0x10] sm:$0xff]
      %v339 = vld [vmem:[%s328 + $0x18] sm:$0xff]
      %v340 = vld [vmem:[%s328 + $0x20] sm:$0xff]
      %v341 = vld [vmem:[%s328 + $0x28] sm:$0xff]
      %v342 = vld [vmem:[%s328 + $0x30] sm:$0xff]
      %v343 = vld [vmem:[%s328 + $0x38] sm:$0xff]
      %v344 = vld [vmem:[%s1] sm:$0xff]
      %v345 = vld [vmem:[%s1 + $0x8] sm:$0xff]
      %v346 = vld [vmem:[%s2] sm:$0x1]
      %v348 = vlaneseq
      %v349 = vshrl.u32 %v348, 7
      %v350 = vsub.s32 0, %v349
      %v351 = vrot.slane %v346, %v350
      %vm353 = vcmask 130048
      %v355 = vsel %vm353, %v336, 0
      %v358 = vsel %vm353, %v337, 0
      %v361 = vsel %vm353, %v338, 0
      %v364 = vsel %vm353, %v339, 0
      %v367 = vsel %vm353, %v340, 0
      %v370 = vsel %vm353, %v341, 0
      %v373 = vsel %vm353, %v342, 0
      %v376 = vsel %vm353, %v343, 0
      %378 = vmatprep.subr.mxu0 0.0
      %379 = vmatpush1.msra.mxu0 %v344
      %380 = vmatprep.subr.mxu0 0.0
      %381 = vmatpush1.msra.mxu0 %v345
      %382 = vmatprep.subr.mxu0 0.0
      %383 = vmatpush1.msra.mxu0 0.0
      %384 = vmatprep.subr.mxu0 0.0
      %385 = vmatpush1.msra.mxu0 0.0
      %386 = vmatprep.subr.mxu0 0.0
      %387 = vmatpush1.msra.mxu0 0.0
      %388 = vmatprep.subr.mxu0 0.0
      %389 = vmatpush1.msra.mxu0 0.0
      %390 = vmatprep.subr.mxu0 0.0
      %391 = vmatpush1.msra.mxu0 0.0
      %392 = vmatprep.subr.mxu0 0.0
      %393 = vmatpush1.msra.mxu0 0.0
      %394 = vmatprep.subr.mxu0 0.0
      %395 = vmatpush1.msra.mxu0 0.0
      %396 = vmatprep.subr.mxu0 0.0
      %397 = vmatpush1.msra.mxu0 0.0
      %398 = vmatprep.subr.mxu0 0.0
      %399 = vmatpush1.msra.mxu0 0.0
      %400 = vmatprep.subr.mxu0 0.0
      %401 = vmatpush1.msra.mxu0 0.0
      %402 = vmatprep.subr.mxu0 0.0
      %403 = vmatpush1.msra.mxu0 0.0
      %404 = vmatprep.subr.mxu0 0.0
      %405 = vmatpush1.msra.mxu0 0.0
      %406 = vmatprep.subr.mxu0 0.0
      %407 = vmatpush1.msra.mxu0 0.0
      %408 = vmatprep.subr.mxu0 0.0
      %409 = vmatpush1.msra.mxu0 0.0
      %410 = vmatprep.subr.mxu0 0.0
      %411 = vmatpush1.msra.mxu0 0.0
      %412 = vmatprep.subr.mxu0 0.0
      %413 = vmatpush1.msra.mxu0 0.0
      %414 = vmatprep.subr.mxu0 0.0
      %415 = vmatpush1.msra.mxu0 0.0
      %416 = vmatprep.subr.mxu0 0.0
      %417 = vmatpush1.msra.mxu0 0.0
      %418 = vmatprep.subr.mxu0 0.0
      %419 = vmatpush1.msra.mxu0 0.0
      %420 = vmatprep.subr.mxu0 0.0
      %421 = vmatpush1.msra.mxu0 0.0
      %422 = vmatprep.subr.mxu0 0.0
      %423 = vmatpush1.msra.mxu0 0.0
      %424 = vmatprep.subr.mxu0 0.0
      %425 = vmatpush1.msra.mxu0 0.0
      %426 = vmatprep.subr.mxu0 0.0
      %427 = vmatpush1.msra.mxu0 0.0
      %428 = vmatprep.subr.mxu0 0.0
      %429 = vmatpush1.msra.mxu0 0.0
      %430 = vmatprep.subr.mxu0 0.0
      %431 = vmatpush1.msra.mxu0 0.0
      %432 = vmatprep.subr.mxu0 0.0
      %433 = vmatpush1.msra.mxu0 0.0
      %434 = vmatprep.subr.mxu0 0.0
      %435 = vmatpush1.msra.mxu0 0.0
      %436 = vmatprep.subr.mxu0 0.0
      %437 = vmatpush1.msra.mxu0 0.0
      %438 = vmatprep.subr.mxu0 0.0
      %439 = vmatpush1.msra.mxu0 0.0
      %440 = vmatprep.subr.mxu0 0.0
      %441 = vmatpush1.msra.mxu0 0.0
      %442 = vmatprep.mubr.f32.mxu0 0.0
      %443 = vmatmul.mubr.f32.gmra.mrb[0].mxu0 %v355
      %v444 = vpop.f32.mrb[0].mxu0
      %v445 = vadd.f32 %v351, %v444
      %v446 = vpop.f32.mrb[0].mxu0
      %447 = vmatprep.mubr.f32.mxu0 0.0
      %448 = vmatmul.mubr.f32.gmra.mrb[0].mxu0 %v358
      %v449 = vpop.f32.mrb[0].mxu0
      %v450 = vadd.f32 %v351, %v449
      %v451 = vpop.f32.mrb[0].mxu0
      %452 = vmatprep.mubr.f32.mxu0 0.0
      %453 = vmatmul.mubr.f32.gmra.mrb[0].mxu0 %v361
      %v454 = vpop.f32.mrb[0].mxu0
      %v455 = vadd.f32 %v351, %v454
      %v456 = vpop.f32.mrb[0].mxu0
      %457 = vmatprep.mubr.f32.mxu0 0.0
      %458 = vmatmul.mubr.f32.gmra.mrb[0].mxu0 %v364
      %v459 = vpop.f32.mrb[0].mxu0
      %v460 = vadd.f32 %v351, %v459
      %v461 = vpop.f32.mrb[0].mxu0
      %462 = vmatprep.mubr.f32.mxu0 0.0
      %463 = vmatmul.mubr.f32.gmra.mrb[0].mxu0 %v367
      %v464 = vpop.f32.mrb[0].mxu0
      %v465 = vadd.f32 %v351, %v464
      %v466 = vpop.f32.mrb[0].mxu0
      %467 = vmatprep.mubr.f32.mxu0 0.0
      %468 = vmatmul.mubr.f32.gmra.mrb[0].mxu0 %v370
      %v469 = vpop.f32.mrb[0].mxu0
      %v470 = vadd.f32 %v351, %v469
      %v471 = vpop.f32.mrb[0].mxu0
      %472 = vmatprep.mubr.f32.mxu0 0.0
      %473 = vmatmul.mubr.f32.gmra.mrb[0].mxu0 %v373
      %v474 = vpop.f32.mrb[0].mxu0
      %v475 = vadd.f32 %v351, %v474
      %v476 = vpop.f32.mrb[0].mxu0
      %477 = vmatprep.mubr.f32.mxu0 0.0
      %478 = vmatmul.mubr.f32.gmra.mrb[0].mxu0 %v376
      %v479 = vpop.f32.mrb[0].mxu0
      %v480 = vadd.f32 %v351, %v479
      %v481 = vpop.f32.mrb[0].mxu0
      %482 = vdwg.mxu0
      %v483 = vmax.f32 %v445, 0.0
      %v484 = vmax.f32 %v450, 0.0
      %v485 = vmax.f32 %v455, 0.0
      %v486 = vmax.f32 %v460, 0.0
      %v487 = vmax.f32 %v465, 0.0
      %v488 = vmax.f32 %v470, 0.0
      %v489 = vmax.f32 %v475, 0.0
      %v490 = vmax.f32 %v480, 0.0
      %v491 = vld [vmem:[%s3] sm:$0xff]
      %v492 = vld [vmem:[%s3 + $0x8] sm:$0xff]
      %v493 = vld [vmem:[%s3 + $0x10] sm:$0xff]
      %v494 = vld [vmem:[%s3 + $0x18] sm:$0xff]
      %v495 = vld [vmem:[%s4] sm:$0x1]
      %v497 = vlaneseq
      %v498 = vshrl.u32 %v497, 7
      %v499 = vsub.s32 0, %v498
      %v500 = vrot.slane %v495, %v499
      %vm502 = vcmask 261120
      %v504 = vsel %vm502, %v483, 0
      %v507 = vsel %vm502, %v484, 0
      %v510 = vsel %vm502, %v485, 0
      %v513 = vsel %vm502, %v486, 0
      %v516 = vsel %vm502, %v487, 0
      %v519 = vsel %vm502, %v488, 0
      %v522 = vsel %vm502, %v489, 0
      %v525 = vsel %vm502, %v490, 0
      %527 = vmatprep.subr.mxu0 0.0
      %528 = vmatpush1.msra.mxu0 %v491
      %529 = vmatprep.subr.mxu0 0.0
      %530 = vmatpush1.msra.mxu0 %v492
      %531 = vmatprep.subr.mxu0 0.0
      %532 = vmatpush1.msra.mxu0 %v493
      %533 = vmatprep.subr.mxu0 0.0
      %534 = vmatpush1.msra.mxu0 %v494
      %535 = vmatprep.subr.mxu0 0.0
      %536 = vmatpush1.msra.mxu0 0.0
      %537 = vmatprep.subr.mxu0 0.0
      %538 = vmatpush1.msra.mxu0 0.0
      %539 = vmatprep.subr.mxu0 0.0
      %540 = vmatpush1.msra.mxu0 0.0
      %541 = vmatprep.subr.mxu0 0.0
      %542 = vmatpush1.msra.mxu0 0.0
      %543 = vmatprep.subr.mxu0 0.0
      %544 = vmatpush1.msra.mxu0 0.0
      %545 = vmatprep.subr.mxu0 0.0
      %546 = vmatpush1.msra.mxu0 0.0
      %547 = vmatprep.subr.mxu0 0.0
      %548 = vmatpush1.msra.mxu0 0.0
      %549 = vmatprep.subr.mxu0 0.0
      %550 = vmatpush1.msra.mxu0 0.0
      %551 = vmatprep.subr.mxu0 0.0
      %552 = vmatpush1.msra.mxu0 0.0
      %553 = vmatprep.subr.mxu0 0.0
      %554 = vmatpush1.msra.mxu0 0.0
      %555 = vmatprep.subr.mxu0 0.0
      %556 = vmatpush1.msra.mxu0 0.0
      %557 = vmatprep.subr.mxu0 0.0
      %558 = vmatpush1.msra.mxu0 0.0
      %559 = vmatprep.subr.mxu0 0.0
      %560 = vmatpush1.msra.mxu0 0.0
      %561 = vmatprep.subr.mxu0 0.0
      %562 = vmatpush1.msra.mxu0 0.0
      %563 = vmatprep.subr.mxu0 0.0
      %564 = vmatpush1.msra.mxu0 0.0
      %565 = vmatprep.subr.mxu0 0.0
      %566 = vmatpush1.msra.mxu0 0.0
      %567 = vmatprep.subr.mxu0 0.0
      %568 = vmatpush1.msra.mxu0 0.0
      %569 = vmatprep.subr.mxu0 0.0
      %570 = vmatpush1.msra.mxu0 0.0
      %571 = vmatprep.subr.mxu0 0.0
      %572 = vmatpush1.msra.mxu0 0.0
      %573 = vmatprep.subr.mxu0 0.0
      %574 = vmatpush1.msra.mxu0 0.0
      %575 = vmatprep.subr.mxu0 0.0
      %576 = vmatpush1.msra.mxu0 0.0
      %577 = vmatprep.subr.mxu0 0.0
      %578 = vmatpush1.msra.mxu0 0.0
      %579 = vmatprep.subr.mxu0 0.0
      %580 = vmatpush1.msra.mxu0 0.0
      %581 = vmatprep.subr.mxu0 0.0
      %582 = vmatpush1.msra.mxu0 0.0
      %583 = vmatprep.subr.mxu0 0.0
      %584 = vmatpush1.msra.mxu0 0.0
      %585 = vmatprep.subr.mxu0 0.0
      %586 = vmatpush1.msra.mxu0 0.0
      %587 = vmatprep.subr.mxu0 0.0
      %588 = vmatpush1.msra.mxu0 0.0
      %589 = vmatprep.subr.mxu0 0.0
      %590 = vmatpush1.msra.mxu0 0.0
      %591 = vmatprep.mubr.f32.mxu0 0.0
      %592 = vmatmul.mubr.f32.gmra.mrb[0].mxu0 %v504
      %v593 = vpop.f32.mrb[0].mxu0
      %v594 = vadd.f32 %v500, %v593
      %v595 = vpop.f32.mrb[0].mxu0
      %596 = vmatprep.mubr.f32.mxu0 0.0
      %597 = vmatmul.mubr.f32.gmra.mrb[0].mxu0 %v507
      %v598 = vpop.f32.mrb[0].mxu0
      %v599 = vadd.f32 %v500, %v598
      %v600 = vpop.f32.mrb[0].mxu0
      %601 = vmatprep.mubr.f32.mxu0 0.0
      %602 = vmatmul.mubr.f32.gmra.mrb[0].mxu0 %v510
      %v603 = vpop.f32.mrb[0].mxu0
      %v604 = vadd.f32 %v500, %v603
      %v605 = vpop.f32.mrb[0].mxu0
      %606 = vmatprep.mubr.f32.mxu0 0.0
      %607 = vmatmul.mubr.f32.gmra.mrb[0].mxu0 %v513
      %v608 = vpop.f32.mrb[0].mxu0
      %v609 = vadd.f32 %v500, %v608
      %v610 = vpop.f32.mrb[0].mxu0
      %611 = vmatprep.mubr.f32.mxu0 0.0
      %612 = vmatmul.mubr.f32.gmra.mrb[0].mxu0 %v516
      %v613 = vpop.f32.mrb[0].mxu0
      %v614 = vadd.f32 %v500, %v613
      %v615 = vpop.f32.mrb[0].mxu0
      %616 = vmatprep.mubr.f32.mxu0 0.0
      %617 = vmatmul.mubr.f32.gmra.mrb[0].mxu0 %v519
      %v618 = vpop.f32.mrb[0].mxu0
      %v619 = vadd.f32 %v500, %v618
      %v620 = vpop.f32.mrb[0].mxu0
      %621 = vmatprep.mubr.f32.mxu0 0.0
      %622 = vmatmul.mubr.f32.gmra.mrb[0].mxu0 %v522
      %v623 = vpop.f32.mrb[0].mxu0
      %v624 = vadd.f32 %v500, %v623
      %v625 = vpop.f32.mrb[0].mxu0
      %626 = vmatprep.mubr.f32.mxu0 0.0
      %627 = vmatmul.mubr.f32.gmra.mrb[0].mxu0 %v525
      %v628 = vpop.f32.mrb[0].mxu0
      %v629 = vadd.f32 %v500, %v628
      %v630 = vpop.f32.mrb[0].mxu0
      %631 = vdwg.mxu0
      %v632 = vmax.f32 %v594, 0.0
      %v633 = vmax.f32 %v599, 0.0
      %v634 = vmax.f32 %v604, 0.0
      %v635 = vmax.f32 %v609, 0.0
      %v636 = vmax.f32 %v614, 0.0
      %v637 = vmax.f32 %v619, 0.0
      %v638 = vmax.f32 %v624, 0.0
      %v639 = vmax.f32 %v629, 0.0
      %v640 = vld [vmem:[%s5] sm:$0xff]
      %v641 = vld [vmem:[%s5 + $0x8] sm:$0xff]
      %v642 = vld [vmem:[%s5 + $0x10] sm:$0xff]
      %v643 = vld [vmem:[%s5 + $0x18] sm:$0xff]
      %v644 = vld [vmem:[%s6] sm:$0x1]
      %v646 = vlaneseq
      %v647 = vshrl.u32 %v646, 7
      %v648 = vsub.s32 0, %v647
      %v649 = vrot.slane %v644, %v648
      %v652 = vsel %vm502, %v632, 0
      %v655 = vsel %vm502, %v633, 0
      %v658 = vsel %vm502, %v634, 0
      %v661 = vsel %vm502, %v635, 0
      %v664 = vsel %vm502, %v636, 0
      %v667 = vsel %vm502, %v637, 0
      %v670 = vsel %vm502, %v638, 0
      %v673 = vsel %vm502, %v639, 0
      %675 = vmatprep.subr.mxu0 0.0
      %676 = vmatpush1.msra.mxu0 %v640
      %677 = vmatprep.subr.mxu0 0.0
      %678 = vmatpush1.msra.mxu0 %v641
      %679 = vmatprep.subr.mxu0 0.0
      %680 = vmatpush1.msra.mxu0 %v642
      %681 = vmatprep.subr.mxu0 0.0
      %682 = vmatpush1.msra.mxu0 %v643
      %683 = vmatprep.subr.mxu0 0.0
      %684 = vmatpush1.msra.mxu0 0.0
      %685 = vmatprep.subr.mxu0 0.0
      %686 = vmatpush1.msra.mxu0 0.0
      %687 = vmatprep.subr.mxu0 0.0
      %688 = vmatpush1.msra.mxu0 0.0
      %689 = vmatprep.subr.mxu0 0.0
      %690 = vmatpush1.msra.mxu0 0.0
      %691 = vmatprep.subr.mxu0 0.0
      %692 = vmatpush1.msra.mxu0 0.0
      %693 = vmatprep.subr.mxu0 0.0
      %694 = vmatpush1.msra.mxu0 0.0
      %695 = vmatprep.subr.mxu0 0.0
      %696 = vmatpush1.msra.mxu0 0.0
      %697 = vmatprep.subr.mxu0 0.0
      %698 = vmatpush1.msra.mxu0 0.0
      %699 = vmatprep.subr.mxu0 0.0
      %700 = vmatpush1.msra.mxu0 0.0
      %701 = vmatprep.subr.mxu0 0.0
      %702 = vmatpush1.msra.mxu0 0.0
      %703 = vmatprep.subr.mxu0 0.0
      %704 = vmatpush1.msra.mxu0 0.0
      %705 = vmatprep.subr.mxu0 0.0
      %706 = vmatpush1.msra.mxu0 0.0
      %707 = vmatprep.subr.mxu0 0.0
      %708 = vmatpush1.msra.mxu0 0.0
      %709 = vmatprep.subr.mxu0 0.0
      %710 = vmatpush1.msra.mxu0 0.0
      %711 = vmatprep.subr.mxu0 0.0
      %712 = vmatpush1.msra.mxu0 0.0
      %713 = vmatprep.subr.mxu0 0.0
      %714 = vmatpush1.msra.mxu0 0.0
      %715 = vmatprep.subr.mxu0 0.0
      %716 = vmatpush1.msra.mxu0 0.0
      %717 = vmatprep.subr.mxu0 0.0
      %718 = vmatpush1.msra.mxu0 0.0
      %719 = vmatprep.subr.mxu0 0.0
      %720 = vmatpush1.msra.mxu0 0.0
      %721 = vmatprep.subr.mxu0 0.0
      %722 = vmatpush1.msra.mxu0 0.0
      %723 = vmatprep.subr.mxu0 0.0
      %724 = vmatpush1.msra.mxu0 0.0
      %725 = vmatprep.subr.mxu0 0.0
      %726 = vmatpush1.msra.mxu0 0.0
      %727 = vmatprep.subr.mxu0 0.0
      %728 = vmatpush1.msra.mxu0 0.0
      %729 = vmatprep.subr.mxu0 0.0
      %730 = vmatpush1.msra.mxu0 0.0
      %731 = vmatprep.subr.mxu0 0.0
      %732 = vmatpush1.msra.mxu0 0.0
      %733 = vmatprep.subr.mxu0 0.0
      %734 = vmatpush1.msra.mxu0 0.0
      %735 = vmatprep.subr.mxu0 0.0
      %736 = vmatpush1.msra.mxu0 0.0
      %737 = vmatprep.subr.mxu0 0.0
      %738 = vmatpush1.msra.mxu0 0.0
      %739 = vmatprep.mubr.f32.mxu0 0.0
      %740 = vmatmul.mubr.f32.gmra.mrb[0].mxu0 %v652
      %v741 = vpop.f32.mrb[0].mxu0
      %v742 = vadd.f32 %v649, %v741
      %v743 = vpop.f32.mrb[0].mxu0
      %744 = vmatprep.mubr.f32.mxu0 0.0
      %745 = vmatmul.mubr.f32.gmra.mrb[0].mxu0 %v655
      %v746 = vpop.f32.mrb[0].mxu0
      %v747 = vadd.f32 %v649, %v746
      %v748 = vpop.f32.mrb[0].mxu0
      %749 = vmatprep.mubr.f32.mxu0 0.0
      %750 = vmatmul.mubr.f32.gmra.mrb[0].mxu0 %v658
      %v751 = vpop.f32.mrb[0].mxu0
      %v752 = vadd.f32 %v649, %v751
      %v753 = vpop.f32.mrb[0].mxu0
      %754 = vmatprep.mubr.f32.mxu0 0.0
      %755 = vmatmul.mubr.f32.gmra.mrb[0].mxu0 %v661
      %v756 = vpop.f32.mrb[0].mxu0
      %v757 = vadd.f32 %v649, %v756
      %v758 = vpop.f32.mrb[0].mxu0
      %759 = vmatprep.mubr.f32.mxu0 0.0
      %760 = vmatmul.mubr.f32.gmra.mrb[0].mxu0 %v664
      %v761 = vpop.f32.mrb[0].mxu0
      %v762 = vadd.f32 %v649, %v761
      %v763 = vpop.f32.mrb[0].mxu0
      %764 = vmatprep.mubr.f32.mxu0 0.0
      %765 = vmatmul.mubr.f32.gmra.mrb[0].mxu0 %v667
      %v766 = vpop.f32.mrb[0].mxu0
      %v767 = vadd.f32 %v649, %v766
      %v768 = vpop.f32.mrb[0].mxu0
      %769 = vmatprep.mubr.f32.mxu0 0.0
      %770 = vmatmul.mubr.f32.gmra.mrb[0].mxu0 %v670
      %v771 = vpop.f32.mrb[0].mxu0
      %v772 = vadd.f32 %v649, %v771
      %v773 = vpop.f32.mrb[0].mxu0
      %774 = vmatprep.mubr.f32.mxu0 0.0
      %775 = vmatmul.mubr.f32.gmra.mrb[0].mxu0 %v673
      %v776 = vpop.f32.mrb[0].mxu0
      %v777 = vadd.f32 %v649, %v776
      %v778 = vpop.f32.mrb[0].mxu0
      %779 = vdwg.mxu0
      %v780 = vmax.f32 %v742, 0.0
      %v781 = vmax.f32 %v747, 0.0
      %v782 = vmax.f32 %v752, 0.0
      %v783 = vmax.f32 %v757, 0.0
      %v784 = vmax.f32 %v762, 0.0
      %v785 = vmax.f32 %v767, 0.0
      %v786 = vmax.f32 %v772, 0.0
      %v787 = vmax.f32 %v777, 0.0
      %v788 = vld [vmem:[%s7] sm:$0xff]
      %v789 = vld [vmem:[%s7 + $0x8] sm:$0xff]
      %v790 = vld [vmem:[%s8] sm:$0x1]
      %v792 = vlaneseq
      %v793 = vshrl.u32 %v792, 7
      %v794 = vsub.s32 0, %v793
      %v795 = vrot.slane %v790, %v794
      %v798 = vsel %vm353, %v780, 0
      %v801 = vsel %vm353, %v781, 0
      %v804 = vsel %vm353, %v782, 0
      %v807 = vsel %vm353, %v783, 0
      %v810 = vsel %vm353, %v784, 0
      %v813 = vsel %vm353, %v785, 0
      %v816 = vsel %vm353, %v786, 0
      %v819 = vsel %vm353, %v787, 0
      %821 = vmatprep.subr.mxu0 0.0
      %822 = vmatpush1.msra.mxu0 %v788
      %823 = vmatprep.subr.mxu0 0.0
      %824 = vmatpush1.msra.mxu0 %v789
      %825 = vmatprep.subr.mxu0 0.0
      %826 = vmatpush1.msra.mxu0 0.0
      %827 = vmatprep.subr.mxu0 0.0
      %828 = vmatpush1.msra.mxu0 0.0
      %829 = vmatprep.subr.mxu0 0.0
      %830 = vmatpush1.msra.mxu0 0.0
      %831 = vmatprep.subr.mxu0 0.0
      %832 = vmatpush1.msra.mxu0 0.0
      %833 = vmatprep.subr.mxu0 0.0
      %834 = vmatpush1.msra.mxu0 0.0
      %835 = vmatprep.subr.mxu0 0.0
      %836 = vmatpush1.msra.mxu0 0.0
      %837 = vmatprep.subr.mxu0 0.0
      %838 = vmatpush1.msra.mxu0 0.0
      %839 = vmatprep.subr.mxu0 0.0
      %840 = vmatpush1.msra.mxu0 0.0
      %841 = vmatprep.subr.mxu0 0.0
      %842 = vmatpush1.msra.mxu0 0.0
      %843 = vmatprep.subr.mxu0 0.0
      %844 = vmatpush1.msra.mxu0 0.0
      %845 = vmatprep.subr.mxu0 0.0
      %846 = vmatpush1.msra.mxu0 0.0
      %847 = vmatprep.subr.mxu0 0.0
      %848 = vmatpush1.msra.mxu0 0.0
      %849 = vmatprep.subr.mxu0 0.0
      %850 = vmatpush1.msra.mxu0 0.0
      %851 = vmatprep.subr.mxu0 0.0
      %852 = vmatpush1.msra.mxu0 0.0
      %853 = vmatprep.subr.mxu0 0.0
      %854 = vmatpush1.msra.mxu0 0.0
      %855 = vmatprep.subr.mxu0 0.0
      %856 = vmatpush1.msra.mxu0 0.0
      %857 = vmatprep.subr.mxu0 0.0
      %858 = vmatpush1.msra.mxu0 0.0
      %859 = vmatprep.subr.mxu0 0.0
      %860 = vmatpush1.msra.mxu0 0.0
      %861 = vmatprep.subr.mxu0 0.0
      %862 = vmatpush1.msra.mxu0 0.0
      %863 = vmatprep.subr.mxu0 0.0
      %864 = vmatpush1.msra.mxu0 0.0
      %865 = vmatprep.subr.mxu0 0.0
      %866 = vmatpush1.msra.mxu0 0.0
      %867 = vmatprep.subr.mxu0 0.0
      %868 = vmatpush1.msra.mxu0 0.0
      %869 = vmatprep.subr.mxu0 0.0
      %870 = vmatpush1.msra.mxu0 0.0
      %871 = vmatprep.subr.mxu0 0.0
      %872 = vmatpush1.msra.mxu0 0.0
      %873 = vmatprep.subr.mxu0 0.0
      %874 = vmatpush1.msra.mxu0 0.0
      %875 = vmatprep.subr.mxu0 0.0
      %876 = vmatpush1.msra.mxu0 0.0
      %877 = vmatprep.subr.mxu0 0.0
      %878 = vmatpush1.msra.mxu0 0.0
      %879 = vmatprep.subr.mxu0 0.0
      %880 = vmatpush1.msra.mxu0 0.0
      %881 = vmatprep.subr.mxu0 0.0
      %882 = vmatpush1.msra.mxu0 0.0
      %883 = vmatprep.subr.mxu0 0.0
      %884 = vmatpush1.msra.mxu0 0.0
      %885 = vmatprep.mubr.f32.mxu0 0.0
      %886 = vmatmul.mubr.f32.gmra.mrb[0].mxu0 %v798
      %v887 = vpop.f32.mrb[0].mxu0
      %v888 = vadd.f32 %v795, %v887
      %v889 = vpop.f32.mrb[0].mxu0
      %890 = vmatprep.mubr.f32.mxu0 0.0
      %891 = vmatmul.mubr.f32.gmra.mrb[0].mxu0 %v801
      %v892 = vpop.f32.mrb[0].mxu0
      %v893 = vadd.f32 %v795, %v892
      %v894 = vpop.f32.mrb[0].mxu0
      %895 = vmatprep.mubr.f32.mxu0 0.0
      %896 = vmatmul.mubr.f32.gmra.mrb[0].mxu0 %v804
      %v897 = vpop.f32.mrb[0].mxu0
      %v898 = vadd.f32 %v795, %v897
      %v899 = vpop.f32.mrb[0].mxu0
      %900 = vmatprep.mubr.f32.mxu0 0.0
      %901 = vmatmul.mubr.f32.gmra.mrb[0].mxu0 %v807
      %v902 = vpop.f32.mrb[0].mxu0
      %v903 = vadd.f32 %v795, %v902
      %v904 = vpop.f32.mrb[0].mxu0
      %905 = vmatprep.mubr.f32.mxu0 0.0
      %906 = vmatmul.mubr.f32.gmra.mrb[0].mxu0 %v810
      %v907 = vpop.f32.mrb[0].mxu0
      %v908 = vadd.f32 %v795, %v907
      %v909 = vpop.f32.mrb[0].mxu0
      %910 = vmatprep.mubr.f32.mxu0 0.0
      %911 = vmatmul.mubr.f32.gmra.mrb[0].mxu0 %v813
      %v912 = vpop.f32.mrb[0].mxu0
      %v913 = vadd.f32 %v795, %v912
      %v914 = vpop.f32.mrb[0].mxu0
      %915 = vmatprep.mubr.f32.mxu0 0.0
      %916 = vmatmul.mubr.f32.gmra.mrb[0].mxu0 %v816
      %v917 = vpop.f32.mrb[0].mxu0
      %v918 = vadd.f32 %v795, %v917
      %v919 = vpop.f32.mrb[0].mxu0
      %920 = vmatprep.mubr.f32.mxu0 0.0
      %921 = vmatmul.mubr.f32.gmra.mrb[0].mxu0 %v819
      %v922 = vpop.f32.mrb[0].mxu0
      %v923 = vadd.f32 %v795, %v922
      %v924 = vpop.f32.mrb[0].mxu0
      %925 = vdwg.mxu0
      %926 = vst.msk [vmem:[%s334] sm:$0xff] %vm502, %v888
      %927 = vst.msk [vmem:[%s334 + $0x8] sm:$0xff] %vm502, %v893
      %928 = vst.msk [vmem:[%s334 + $0x10] sm:$0xff] %vm502, %v898
      %929 = vst.msk [vmem:[%s334 + $0x18] sm:$0xff] %vm502, %v903
      %930 = vst.msk [vmem:[%s334 + $0x20] sm:$0xff] %vm502, %v908
      %931 = vst.msk [vmem:[%s334 + $0x28] sm:$0xff] %vm502, %v913
      %932 = vst.msk [vmem:[%s334 + $0x30] sm:$0xff] %vm502, %v918
      %933 = vst.msk [vmem:[%s334 + $0x38] sm:$0xff] %vm502, %v923
      %s934 = smul.u32 8, %s20
      %p935 = scmp.lt.s32.totalorder %s934, 31
      %s936 = scalar_select %p935, %s934, 31
      %s937 = smul.addr %s936, 8
      %s938 = scalar_lea.vmem %s9, %s937
      // Predicated region
      $region57: #{tpu_custom_call.1} parent=55 // pred_check
        %p939 = pneg %p232
      $region58: #{tpu_custom_call.1} parent=55 // pred_check_branch
        %941 = sbr.rel (%p939) target = $region60
      $region59: #{tpu_custom_call.1} parent=55 // pred_region
        %s942 = smul.u32 8, %s20
      $region60: #{tpu_custom_call.1} parent=55 // pred_fallthru
        _
    $region56: #{tpu_custom_call.1} parent=5 // pred_fallthru
      _
    %p943 = scmp.le.s32.totalorder 2, %s15
    // Predicated region
    $region61: #{tpu_custom_call.1} parent=5 // pred_check
      %p944 = pneg %p943
    $region62: #{tpu_custom_call.1} parent=5 // pred_check_branch
      %946 = sbr.rel (%p944) target = $region64
    $region63: #{tpu_custom_call.1} parent=5 // pred_region
      %s947 = ssub.s32 %s15, 2
      // Predicated region
      $region65: #{tpu_custom_call.1} parent=63 // pred_check
        %p948 = pneg %p238
      $region66: #{tpu_custom_call.1} parent=63 // pred_check_branch
        %950 = sbr.rel (%p948) target = $region68
      $region67: #{tpu_custom_call.1} parent=63 // pred_region
        %s951 = smul.u32 8, %s21
        %p952 = scmp.lt.s32.totalorder %s951, 31
        %s953 = scalar_select %p952, %s951, 31
        %s954 = smul.addr %s953, 8
        %s955 = scalar_lea.vmem %s9, %s954
      $region68: #{tpu_custom_call.1} parent=63 // pred_fallthru
        _
    $region64: #{tpu_custom_call.1} parent=5 // pred_fallthru
      _
  $region6: #{tpu_custom_call.1} parent=0 // loop_footer
    %s19 = sadd.s32 1, %s15
  $region7: #{tpu_custom_call.1} parent=0 // loop_footer_branch
    %14 = sbr.rel target = $region3
  $region8: #{tpu_custom_call.1} parent=0 // loop_exit
    _

</llo_original>
